<compile_context>
chip_gen: v7x
topology: tpu7x:2x2x1
jax: 0.10.0
libtpu: 0.0.40
codegen_flags: <defaults>
</compile_context>

<pallas_src>
import functools

import jax
import jax.numpy as jnp
from jax.experimental import pallas as pl
from jax.experimental.pallas import tpu as pltpu


def _round_up(v, m):
    return (v + m - 1) // m * m


_BIG = 1e30            # sentinel squared distance for padded coarse columns
_VALID_THRESH = 5e29   # selections with d^2 >= this get zero weight


def fp_kernel(posf_ref, xskip_ref, posc_ref, x_ref,
              w1y_ref, w1s_ref, b1_ref, w2_ref, b2_ref,
              o_ref, *, k):
    """One (batch, fine-tile) grid point: knn-interpolation + (split-concat) MLP.

    posf_ref : [T, 5]         fine points, augmented [x, y, z, |p|^2, 1]
    xskip_ref: [T, Cs]        skip features (this tile)
    posc_ref : [5, Ncb]       this batch's coarse points, augmented rows
                              [-2x, -2y, -2z, 1, |p|^2]; padded cols: |p|^2=BIG
    x_ref    : [Ncb, Cin]     this batch's coarse features (padded rows zero)
    w1y_ref  : [Cin, H]       first linear, rows acting on interpolated feats
    w1s_ref  : [Cs, H]        first linear, rows acting on skip feats
    b1_ref   : [1, H]
    w2_ref   : [H, Cout_pad]  second linear (lane-padded to mult of 128)
    b2_ref   : [1, Cout_pad]
    o_ref    : [T, Cout_pad]
    """
    t = posf_ref.shape[0]
    ncb = x_ref.shape[0]
    big = jnp.float32(_BIG)
    thresh = jnp.float32(_VALID_THRESH)

    # Pairwise squared distances in ONE MXU matmul (the MXU is idle here, the
    # VPU is the binding unit):  d2 = |pf|^2 + |pc|^2 - 2 pf.pc.
    d2 = jnp.dot(posf_ref[...], posc_ref[...],
                 preferred_element_type=jnp.float32)            # [T, Ncb]
    dwork = jnp.maximum(d2, 0.0)    # guard cancellation-induced tiny negatives

    # Iterative exact-k nearest selection (ties -> lowest index, matching
    # lax.top_k).  Each step picks exactly one column per row and writes its
    # inverse-square weight into a single [T,Ncb] matrix via one select.
    col = jax.lax.broadcasted_iota(jnp.int32, (t, ncb), 1)
    wacc = jnp.zeros((t, ncb), jnp.float32)
    den = jnp.zeros((t, 1), jnp.float32)
    for step in range(k):                                       # k small/static
        m = jnp.min(dwork, axis=1, keepdims=True)               # [T,1]
        sel = jnp.min(jnp.where(dwork <= m, col, ncb),
                      axis=1, keepdims=True)                    # first argmin
        onehot = col == sel                                     # [T,Ncb]
        valid = m < thresh                                      # [T,1]
        w = pl.reciprocal(jnp.maximum(m, jnp.float32(1e-16)),
                          approx=True)                          # EUP, not VALU
        wacc = jnp.where(jnp.logical_and(onehot, valid), w, wacc)
        den = den + jnp.where(valid, w, 0.0)                    # running denom
        if step + 1 < k:                                        # last one dead
            dwork = jnp.where(onehot, big, dwork)

    # Single fused gather matmul; denominator accumulated above ([T,1] only).
    num = jnp.dot(wacc, x_ref[...], preferred_element_type=jnp.float32)
    y = num * pl.reciprocal(den, approx=True)                   # [T, Cin]

    # MLP with concat([y, x_skip], dim=1) folded into two matmuls.
    h = jnp.dot(y, w1y_ref[...], preferred_element_type=jnp.float32)
    h = h + jnp.dot(xskip_ref[...], w1s_ref[...],
                    preferred_element_type=jnp.float32)
    h = jnp.maximum(h + b1_ref[...], 0.0)
    o = jnp.maximum(
        jnp.dot(h, w2_ref[...], preferred_element_type=jnp.float32)
        + b2_ref[...], 0.0)
    o_ref[...] = o.astype(o_ref.dtype)


def fp_module_forward(x, pos, batch, x_skip, pos_skip, batch_skip, params,
                      *, k, tile_nf=None, vmem_limit_bytes=None):
    """Pallas-backed FPModule.forward. Returns (features, pos_skip, batch_skip).

    Layout plumbing happens OUTSIDE the kernel: points are re-laid out into
    per-batch [B, n_pad, ...] slabs so each grid step only touches its own
    batch's coarse slice.  Assumes PyG-style sorted/contiguous batch vectors
    and concrete (non-traced) batch arrays.
    """
    w1, b1, w2, b2 = params
    nf = pos_skip.shape[0]
    nc = pos.shape[0]
    cin = x.shape[1]
    cskip = x_skip.shape[1]
    hdim = w1.shape[1]
    cout = w2.shape[1]

    batch_c = jnp.asarray(batch, jnp.int32)
    batch_f = jnp.asarray(batch_skip, jnp.int32)
    B = max(int(jnp.max(batch_c)), int(jnp.max(batch_f))) + 1

    counts_c = jnp.bincount(batch_c, length=B)
    counts_f = jnp.bincount(batch_f, length=B)
    nc_b = int(jnp.max(counts_c))
    nf_b = int(jnp.max(counts_f))

    off_c = jnp.cumsum(counts_c) - counts_c
    off_f = jnp.cumsum(counts_f) - counts_f
    loc_c = jnp.arange(nc, dtype=jnp.int32) - off_c[batch_c]
    loc_f = jnp.arange(nf, dtype=jnp.int32) - off_f[batch_f]

    nc_pad = _round_up(max(nc_b, 1), 128)        # lane dim of the [T,Ncb] work
    cout_pad = _round_up(cout, 128)              # lane-dense output slab

    # Nc-aware fine tile: ~5 live [T, nc_pad] f32 temps must fit comfortably in
    # VMEM (v7x has 64 MiB/TC); larger per-batch Nc -> smaller T.
    if tile_nf is None:
        tile = (24 * 1024 * 1024) // (5 * 4 * nc_pad)
        tile = max(64, min(512, tile))
    else:
        tile = tile_nf
    tile = min(tile, _round_up(max(nf_b, 1), 8))
    tile = max(8, (tile // 8) * 8)
    nf_pad = _round_up(max(nf_b, 1), tile)

    if vmem_limit_bytes is None:
        try:   # v5e/v6e: 128 MiB physical -> ~100 MiB; v7x: 64 MiB -> ~56 MiB
            cap = int(pltpu.get_tpu_info().vmem_capacity_bytes)
            vmem_limit_bytes = min(cap * 7 // 8, 100 * 1024 * 1024)
        except Exception:  # pragma: no cover - conservative fallback
            vmem_limit_bytes = 48 * 1024 * 1024

    # ---- per-batch re-layout (pure XLA, outside the kernel) -----------------
    pos_c = jnp.asarray(pos, jnp.float32)
    pos_f = jnp.asarray(pos_skip, jnp.float32)
    pc2 = jnp.sum(pos_c * pos_c, axis=1)
    pf2 = jnp.sum(pos_f * pos_f, axis=1)

    # Coarse positions, augmented & transposed: rows [-2x,-2y,-2z,1,|p|^2];
    # padded columns keep |p|^2 = BIG so they never earn interpolation weight.
    posc_aug = jnp.zeros((B, 5, nc_pad), jnp.float32).at[:, 4, :].set(_BIG)
    for c in range(3):
        posc_aug = posc_aug.at[batch_c, c, loc_c].set(-2.0 * pos_c[:, c])
    posc_aug = posc_aug.at[batch_c, 3, loc_c].set(1.0)
    posc_aug = posc_aug.at[batch_c, 4, loc_c].set(pc2)

    xc = jnp.zeros((B, nc_pad, cin), jnp.float32).at[batch_c, loc_c].set(
        jnp.asarray(x, jnp.float32))

    # Fine positions, augmented: [x, y, z, |p|^2, 1].
    posf_aug = jnp.zeros((B, nf_pad, 5), jnp.float32)
    for c in range(3):
        posf_aug = posf_aug.at[batch_f, loc_f, c].set(pos_f[:, c])
    posf_aug = posf_aug.at[batch_f, loc_f, 3].set(pf2)
    posf_aug = posf_aug.at[batch_f, loc_f, 4].set(1.0)

    xs = jnp.zeros((B, nf_pad, cskip), jnp.float32).at[batch_f, loc_f].set(
        jnp.asarray(x_skip, jnp.float32))

    # Split w1 (removes the axis=1 concat); lane-pad w2/b2 to cout_pad.
    w1 = jnp.asarray(w1, jnp.float32)
    w1y, w1s = w1[:cin], w1[cin:]
    b1r = jnp.asarray(b1, jnp.float32).reshape(1, hdim)
    w2p = jnp.zeros((hdim, cout_pad), jnp.float32).at[:, :cout].set(
        jnp.asarray(w2, jnp.float32))
    b2p = jnp.zeros((1, cout_pad), jnp.float32).at[:, :cout].set(
        jnp.asarray(b2, jnp.float32).reshape(1, cout))

    def fine(last):      # tiled along the fine axis within one batch slab
        return pl.BlockSpec((None, tile, last), lambda b, t: (b, t, 0))

    def coarse(d0, d1):  # this batch's coarse slice, constant across fine tiles
        return pl.BlockSpec((None, d0, d1), lambda b, t: (b, 0, 0))

    def resident(d0, d1):  # weights: same block for every grid point
        return pl.BlockSpec((d0, d1), lambda b, t: (0, 0))

    out = pl.pallas_call(
        functools.partial(fp_kernel, k=k),
        out_shape=jax.ShapeDtypeStruct((B, nf_pad, cout_pad), jnp.float32),
        grid=(B, nf_pad // tile),
        in_specs=[
            fine(5),                     # fine positions (augmented)
            fine(cskip),                 # skip features
            coarse(5, nc_pad),           # coarse positions (augmented, per batch)
            coarse(nc_pad, cin),         # coarse features (per batch)
            resident(cin, hdim),         # w1_y
            resident(cskip, hdim),       # w1_skip
            resident(1, hdim),           # b1
            resident(hdim, cout_pad),    # w2 (lane-padded)
            resident(1, cout_pad),       # b2 (lane-padded)
        ],
        out_specs=pl.BlockSpec((None, tile, cout_pad), lambda b, t: (b, t, 0)),
        compiler_params=pltpu.CompilerParams(
            dimension_semantics=("parallel", "parallel"),
            vmem_limit_bytes=vmem_limit_bytes),
    )(posf_aug, xs, posc_aug, xc, w1y, w1s, b1r, w2p, b2p)

    feats = out[batch_f, loc_f][:, :cout]          # gather back to flat layout
    return feats, pos_skip, batch_skip


def ref_forward(x, pos, batch, x_skip, pos_skip, batch_skip, params, *, k):
    """Pure-JAX reference mirroring torch_geometric.nn.knn_interpolate + MLP."""
    w1, b1, w2, b2 = params
    d2 = jnp.sum((pos_skip[:, None, :] - pos[None, :, :]) ** 2, axis=-1)
    d2 = jnp.where(batch_skip[:, None] == batch[None, :], d2, jnp.inf)
    neg, idx = jax.lax.top_k(-d2, k)
    dsel = -neg
    w = 1.0 / jnp.clip(dsel, 1e-16)
    feats = x[idx]                                              # [Nf,k,Cin]
    y = jnp.sum(w[..., None] * feats, axis=1) / jnp.sum(w, axis=1, keepdims=True)
    f = jnp.concatenate([y, x_skip], axis=1)
    h = jnp.maximum(f @ w1 + b1, 0.0)
    return jnp.maximum(h @ w2 + b2, 0.0)


if __name__ == "__main__":
    key = jax.random.PRNGKey(0)
    k = 3
    B = 2
    nc_per, nf_per = 8, 16
    Nc, Nf = B * nc_per, B * nf_per
    Cin, Cskip, H, Cout = 8, 8, 32, 16

    ks = jax.random.split(key, 8)
    x = jax.random.normal(ks[0], (Nc, Cin), jnp.float32)
    pos = jax.random.uniform(ks[1], (Nc, 3), jnp.float32)
    x_skip = jax.random.normal(ks[2], (Nf, Cskip), jnp.float32)
    pos_skip = jax.random.uniform(ks[3], (Nf, 3), jnp.float32)
    batch = jnp.repeat(jnp.arange(B, dtype=jnp.int32), nc_per)
    batch_skip = jnp.repeat(jnp.arange(B, dtype=jnp.int32), nf_per)

    # Deterministic parameter init for self.nn = MLP([Cin+Cskip, H, Cout]).
    w1 = 0.1 * jax.random.normal(ks[4], (Cin + Cskip, H), jnp.float32)
    b1 = 0.01 * jnp.ones((1, H), jnp.float32)
    w2 = 0.1 * jax.random.normal(ks[5], (H, Cout), jnp.float32)
    b2 = 0.01 * jnp.ones((1, Cout), jnp.float32)
    params = (w1, b1, w2, b2)

    out, pos_out, batch_out = fp_module_forward(
        x, pos, batch, x_skip, pos_skip, batch_skip, params, k=k)
    out = jax.block_until_ready(out)

    ref = ref_forward(x, pos, batch, x_skip, pos_skip, batch_skip, params, k=k)
    assert out.shape == (Nf, Cout)
    assert pos_out.shape == pos_skip.shape and batch_out.shape == batch_skip.shape
    assert jnp.max(jnp.abs(out - ref)) < 1e-3, "mismatch vs pure-JAX reference"
    print("KERNEL_OK")
</pallas_src>

<mosaic_0001>
module attributes {stable_mosaic.version = 11 : i64} {
  func.func @fp_kernel(%arg0: i32, %arg1: i32, %arg2: memref<1x16x5xf32, #tpu.memory_space<vmem>>, %arg3: memref<1x16x8xf32, #tpu.memory_space<vmem>>, %arg4: memref<1x5x128xf32, #tpu.memory_space<vmem>>, %arg5: memref<1x128x8xf32, #tpu.memory_space<vmem>>, %arg6: memref<8x32xf32, #tpu.memory_space<vmem>>, %arg7: memref<8x32xf32, #tpu.memory_space<vmem>>, %arg8: memref<1x32xf32, #tpu.memory_space<vmem>>, %arg9: memref<32x128xf32, #tpu.memory_space<vmem>>, %arg10: memref<1x128xf32, #tpu.memory_space<vmem>>, %arg11: memref<1x16x128xf32, #tpu.memory_space<vmem>>) attributes {dimension_semantics = [#tpu.dimension_semantics<parallel>, #tpu.dimension_semantics<parallel>], iteration_bounds = array<i64: 2, 1>, scalar_prefetch = 0 : i64, scratch_operands = 0 : i64, tpu.core_type = #tpu.core_type<tc>, window_params = [{transform_indices = @transform_0, window_bounds = array<i64: 1, 16, 5>}, {transform_indices = @transform_1, window_bounds = array<i64: 1, 16, 8>}, {transform_indices = @transform_2, window_bounds = array<i64: 1, 5, 128>}, {transform_indices = @transform_3, window_bounds = array<i64: 1, 128, 8>}, {pipeline_mode = #tpu.pipeline_mode<synchronous>, transform_indices = @transform_4, window_bounds = array<i64: 8, 32>}, {pipeline_mode = #tpu.pipeline_mode<synchronous>, transform_indices = @transform_5, window_bounds = array<i64: 8, 32>}, {pipeline_mode = #tpu.pipeline_mode<synchronous>, transform_indices = @transform_6, window_bounds = array<i64: 1, 32>}, {pipeline_mode = #tpu.pipeline_mode<synchronous>, transform_indices = @transform_7, window_bounds = array<i64: 32, 128>}, {pipeline_mode = #tpu.pipeline_mode<synchronous>, transform_indices = @transform_8, window_bounds = array<i64: 1, 128>}, {transform_indices = @transform_9, window_bounds = array<i64: 1, 16, 128>}]} {
    %c0 = arith.constant 0 : index
    %c0_0 = arith.constant 0 : index
    %c0_1 = arith.constant 0 : index
    %0 = vector.load %arg2[%c0, %c0_0, %c0_1] : memref<1x16x5xf32, #tpu.memory_space<vmem>>, vector<1x16x5xf32>
    %1 = vector.shape_cast %0 : vector<1x16x5xf32> to vector<16x5xf32>
    %c0_2 = arith.constant 0 : index
    %c0_3 = arith.constant 0 : index
    %c0_4 = arith.constant 0 : index
    %2 = vector.load %arg4[%c0_2, %c0_3, %c0_4] : memref<1x5x128xf32, #tpu.memory_space<vmem>>, vector<1x5x128xf32>
    %3 = vector.shape_cast %2 : vector<1x5x128xf32> to vector<5x128xf32>
    %cst = arith.constant dense<0.000000e+00> : vector<16x128xf32>
    %4 = tpu.matmul %1, %3, %cst {dimension_numbers = #tpu.dot_dimension_numbers<[1], [0], [0], [1], [0, 0, 1, 1], [], []>} : vector<16x5xf32>, vector<5x128xf32>, vector<16x128xf32> -> vector<16x128xf32>
    %cst_5 = arith.constant 0.000000e+00 : f32
    %5 = vector.broadcast %cst_5 : f32 to vector<16x128xf32>
    %6 = arith.maximumf %4, %5 : vector<16x128xf32>
    %7 = tpu.iota {dimensions = array<i32: 1>} : vector<16x128xi32>
    %cst_6 = arith.constant 0.000000e+00 : f32
    %8 = vector.broadcast %cst_6 : f32 to vector<16x128xf32>
    %cst_7 = arith.constant 0.000000e+00 : f32
    %9 = vector.broadcast %cst_7 : f32 to vector<16x1xf32>
    %cst_8 = arith.constant dense<0x7F800000> : vector<16xf32>
    %10 = vector.multi_reduction <minimumf>, %6, %cst_8 [1] : vector<16x128xf32> to vector<16xf32>
    %11 = vector.shape_cast %10 : vector<16xf32> to vector<16x1xf32>
    %12 = vector.broadcast %11 : vector<16x1xf32> to vector<16x128xf32>
    %13 = arith.cmpf ole, %6, %12 : vector<16x128xf32>
    %c128_i32 = arith.constant 128 : i32
    %14 = vector.broadcast %c128_i32 : i32 to vector<16x128xi32>
    %15 = arith.select %13, %7, %14 : vector<16x128xi1>, vector<16x128xi32>
    %cst_9 = arith.constant dense<2147483647> : vector<16xi32>
    %16 = vector.multi_reduction <minsi>, %15, %cst_9 [1] : vector<16x128xi32> to vector<16xi32>
    %17 = vector.shape_cast %16 : vector<16xi32> to vector<16x1xi32>
    %18 = vector.broadcast %17 : vector<16x1xi32> to vector<16x128xi32>
    %19 = arith.cmpi eq, %7, %18 : vector<16x128xi32>
    %cst_10 = arith.constant 5.000000e+29 : f32
    %20 = vector.broadcast %cst_10 : f32 to vector<16x1xf32>
    %21 = arith.cmpf olt, %11, %20 : vector<16x1xf32>
    %cst_11 = arith.constant 1.000000e-16 : f32
    %22 = vector.broadcast %cst_11 : f32 to vector<16x1xf32>
    %23 = arith.maximumf %11, %22 : vector<16x1xf32>
    %24 = tpu.reciprocal %23 {approx = true} : vector<16x1xf32> -> vector<16x1xf32>
    %25 = vector.broadcast %21 : vector<16x1xi1> to vector<16x128xi1>
    %26 = arith.andi %19, %25 : vector<16x128xi1>
    %27 = vector.shape_cast %24 : vector<16x1xf32> to vector<16x1xf32>
    %28 = vector.broadcast %27 : vector<16x1xf32> to vector<16x128xf32>
    %29 = arith.select %26, %28, %8 : vector<16x128xi1>, vector<16x128xf32>
    %cst_12 = arith.constant 0.000000e+00 : f32
    %30 = vector.broadcast %cst_12 : f32 to vector<16x1xf32>
    %31 = arith.select %21, %24, %30 : vector<16x1xi1>, vector<16x1xf32>
    %32 = arith.addf %9, %31 : vector<16x1xf32>
    %cst_13 = arith.constant 1.000000e+30 : f32
    %33 = vector.broadcast %cst_13 : f32 to vector<16x128xf32>
    %34 = arith.select %19, %33, %6 : vector<16x128xi1>, vector<16x128xf32>
    %cst_14 = arith.constant dense<0x7F800000> : vector<16xf32>
    %35 = vector.multi_reduction <minimumf>, %34, %cst_14 [1] : vector<16x128xf32> to vector<16xf32>
    %36 = vector.shape_cast %35 : vector<16xf32> to vector<16x1xf32>
    %37 = vector.broadcast %36 : vector<16x1xf32> to vector<16x128xf32>
    %38 = arith.cmpf ole, %34, %37 : vector<16x128xf32>
    %c128_i32_15 = arith.constant 128 : i32
    %39 = vector.broadcast %c128_i32_15 : i32 to vector<16x128xi32>
    %40 = arith.select %38, %7, %39 : vector<16x128xi1>, vector<16x128xi32>
    %cst_16 = arith.constant dense<2147483647> : vector<16xi32>
    %41 = vector.multi_reduction <minsi>, %40, %cst_16 [1] : vector<16x128xi32> to vector<16xi32>
    %42 = vector.shape_cast %41 : vector<16xi32> to vector<16x1xi32>
    %43 = vector.broadcast %42 : vector<16x1xi32> to vector<16x128xi32>
    %44 = arith.cmpi eq, %7, %43 : vector<16x128xi32>
    %cst_17 = arith.constant 5.000000e+29 : f32
    %45 = vector.broadcast %cst_17 : f32 to vector<16x1xf32>
    %46 = arith.cmpf olt, %36, %45 : vector<16x1xf32>
    %cst_18 = arith.constant 1.000000e-16 : f32
    %47 = vector.broadcast %cst_18 : f32 to vector<16x1xf32>
    %48 = arith.maximumf %36, %47 : vector<16x1xf32>
    %49 = tpu.reciprocal %48 {approx = true} : vector<16x1xf32> -> vector<16x1xf32>
    %50 = vector.broadcast %46 : vector<16x1xi1> to vector<16x128xi1>
    %51 = arith.andi %44, %50 : vector<16x128xi1>
    %52 = vector.shape_cast %49 : vector<16x1xf32> to vector<16x1xf32>
    %53 = vector.broadcast %52 : vector<16x1xf32> to vector<16x128xf32>
    %54 = arith.select %51, %53, %29 : vector<16x128xi1>, vector<16x128xf32>
    %cst_19 = arith.constant 0.000000e+00 : f32
    %55 = vector.broadcast %cst_19 : f32 to vector<16x1xf32>
    %56 = arith.select %46, %49, %55 : vector<16x1xi1>, vector<16x1xf32>
    %57 = arith.addf %32, %56 : vector<16x1xf32>
    %cst_20 = arith.constant 1.000000e+30 : f32
    %58 = vector.broadcast %cst_20 : f32 to vector<16x128xf32>
    %59 = arith.select %44, %58, %34 : vector<16x128xi1>, vector<16x128xf32>
    %cst_21 = arith.constant dense<0x7F800000> : vector<16xf32>
    %60 = vector.multi_reduction <minimumf>, %59, %cst_21 [1] : vector<16x128xf32> to vector<16xf32>
    %61 = vector.shape_cast %60 : vector<16xf32> to vector<16x1xf32>
    %62 = vector.broadcast %61 : vector<16x1xf32> to vector<16x128xf32>
    %63 = arith.cmpf ole, %59, %62 : vector<16x128xf32>
    %c128_i32_22 = arith.constant 128 : i32
    %64 = vector.broadcast %c128_i32_22 : i32 to vector<16x128xi32>
    %65 = arith.select %63, %7, %64 : vector<16x128xi1>, vector<16x128xi32>
    %cst_23 = arith.constant dense<2147483647> : vector<16xi32>
    %66 = vector.multi_reduction <minsi>, %65, %cst_23 [1] : vector<16x128xi32> to vector<16xi32>
    %67 = vector.shape_cast %66 : vector<16xi32> to vector<16x1xi32>
    %68 = vector.broadcast %67 : vector<16x1xi32> to vector<16x128xi32>
    %69 = arith.cmpi eq, %7, %68 : vector<16x128xi32>
    %cst_24 = arith.constant 5.000000e+29 : f32
    %70 = vector.broadcast %cst_24 : f32 to vector<16x1xf32>
    %71 = arith.cmpf olt, %61, %70 : vector<16x1xf32>
    %cst_25 = arith.constant 1.000000e-16 : f32
    %72 = vector.broadcast %cst_25 : f32 to vector<16x1xf32>
    %73 = arith.maximumf %61, %72 : vector<16x1xf32>
    %74 = tpu.reciprocal %73 {approx = true} : vector<16x1xf32> -> vector<16x1xf32>
    %75 = vector.broadcast %71 : vector<16x1xi1> to vector<16x128xi1>
    %76 = arith.andi %69, %75 : vector<16x128xi1>
    %77 = vector.shape_cast %74 : vector<16x1xf32> to vector<16x1xf32>
    %78 = vector.broadcast %77 : vector<16x1xf32> to vector<16x128xf32>
    %79 = arith.select %76, %78, %54 : vector<16x128xi1>, vector<16x128xf32>
    %cst_26 = arith.constant 0.000000e+00 : f32
    %80 = vector.broadcast %cst_26 : f32 to vector<16x1xf32>
    %81 = arith.select %71, %74, %80 : vector<16x1xi1>, vector<16x1xf32>
    %82 = arith.addf %57, %81 : vector<16x1xf32>
    %c0_27 = arith.constant 0 : index
    %c0_28 = arith.constant 0 : index
    %c0_29 = arith.constant 0 : index
    %83 = vector.load %arg5[%c0_27, %c0_28, %c0_29] : memref<1x128x8xf32, #tpu.memory_space<vmem>>, vector<1x128x8xf32>
    %84 = vector.shape_cast %83 : vector<1x128x8xf32> to vector<128x8xf32>
    %cst_30 = arith.constant dense<0.000000e+00> : vector<16x8xf32>
    %85 = tpu.matmul %79, %84, %cst_30 {dimension_numbers = #tpu.dot_dimension_numbers<[1], [0], [0], [1], [0, 0, 1, 1], [], []>} : vector<16x128xf32>, vector<128x8xf32>, vector<16x8xf32> -> vector<16x8xf32>
    %86 = tpu.reciprocal %82 {approx = true} : vector<16x1xf32> -> vector<16x1xf32>
    %87 = vector.broadcast %86 : vector<16x1xf32> to vector<16x8xf32>
    %88 = arith.mulf %85, %87 : vector<16x8xf32>
    %c0_31 = arith.constant 0 : index
    %c0_32 = arith.constant 0 : index
    %89 = vector.load %arg6[%c0_31, %c0_32] : memref<8x32xf32, #tpu.memory_space<vmem>>, vector<8x32xf32>
    %cst_33 = arith.constant dense<0.000000e+00> : vector<16x32xf32>
    %90 = tpu.matmul %88, %89, %cst_33 {dimension_numbers = #tpu.dot_dimension_numbers<[1], [0], [0], [1], [0, 0, 1, 1], [], []>} : vector<16x8xf32>, vector<8x32xf32>, vector<16x32xf32> -> vector<16x32xf32>
    %c0_34 = arith.constant 0 : index
    %c0_35 = arith.constant 0 : index
    %c0_36 = arith.constant 0 : index
    %91 = vector.load %arg3[%c0_34, %c0_35, %c0_36] : memref<1x16x8xf32, #tpu.memory_space<vmem>>, vector<1x16x8xf32>
    %92 = vector.shape_cast %91 : vector<1x16x8xf32> to vector<16x8xf32>
    %c0_37 = arith.constant 0 : index
    %c0_38 = arith.constant 0 : index
    %93 = vector.load %arg7[%c0_37, %c0_38] : memref<8x32xf32, #tpu.memory_space<vmem>>, vector<8x32xf32>
    %cst_39 = arith.constant dense<0.000000e+00> : vector<16x32xf32>
    %94 = tpu.matmul %92, %93, %cst_39 {dimension_numbers = #tpu.dot_dimension_numbers<[1], [0], [0], [1], [0, 0, 1, 1], [], []>} : vector<16x8xf32>, vector<8x32xf32>, vector<16x32xf32> -> vector<16x32xf32>
    %95 = arith.addf %90, %94 : vector<16x32xf32>
    %c0_40 = arith.constant 0 : index
    %c0_41 = arith.constant 0 : index
    %96 = vector.load %arg8[%c0_40, %c0_41] : memref<1x32xf32, #tpu.memory_space<vmem>>, vector<1x32xf32>
    %97 = vector.broadcast %96 : vector<1x32xf32> to vector<16x32xf32>
    %98 = arith.addf %95, %97 : vector<16x32xf32>
    %cst_42 = arith.constant 0.000000e+00 : f32
    %99 = vector.broadcast %cst_42 : f32 to vector<16x32xf32>
    %100 = arith.maximumf %98, %99 : vector<16x32xf32>
    %c0_43 = arith.constant 0 : index
    %c0_44 = arith.constant 0 : index
    %101 = vector.load %arg9[%c0_43, %c0_44] : memref<32x128xf32, #tpu.memory_space<vmem>>, vector<32x128xf32>
    %cst_45 = arith.constant dense<0.000000e+00> : vector<16x128xf32>
    %102 = tpu.matmul %100, %101, %cst_45 {dimension_numbers = #tpu.dot_dimension_numbers<[1], [0], [0], [1], [0, 0, 1, 1], [], []>} : vector<16x32xf32>, vector<32x128xf32>, vector<16x128xf32> -> vector<16x128xf32>
    %c0_46 = arith.constant 0 : index
    %c0_47 = arith.constant 0 : index
    %103 = vector.load %arg10[%c0_46, %c0_47] : memref<1x128xf32, #tpu.memory_space<vmem>>, vector<1x128xf32>
    %104 = vector.broadcast %103 : vector<1x128xf32> to vector<16x128xf32>
    %105 = arith.addf %102, %104 : vector<16x128xf32>
    %cst_48 = arith.constant 0.000000e+00 : f32
    %106 = vector.broadcast %cst_48 : f32 to vector<16x128xf32>
    %107 = arith.maximumf %105, %106 : vector<16x128xf32>
    %c0_49 = arith.constant 0 : index
    %c0_50 = arith.constant 0 : index
    %c0_51 = arith.constant 0 : index
    %108 = vector.load %arg11[%c0_49, %c0_50, %c0_51] : memref<1x16x128xf32, #tpu.memory_space<vmem>>, vector<1x16x128xf32>
    %109 = vector.shape_cast %108 : vector<1x16x128xf32> to vector<16x128xf32>
    %110 = vector.shape_cast %107 : vector<16x128xf32> to vector<1x16x128xf32>
    tpu.vector_store %arg11[%c0_49, %c0_50, %c0_51], %110 {strides = array<i32>} : memref<1x16x128xf32, #tpu.memory_space<vmem>>, vector<1x16x128xf32>,
    return
  }
  func.func @transform_0(%arg0: i32, %arg1: i32) -> (i32, i32, i32) {
    %c0_i32 = arith.constant 0 : i32
    %c0_i32_0 = arith.constant 0 : i32
    return %arg0, %arg1, %c0_i32 : i32, i32, i32
  }
  func.func @transform_1(%arg0: i32, %arg1: i32) -> (i32, i32, i32) {
    %c0_i32 = arith.constant 0 : i32
    %c0_i32_0 = arith.constant 0 : i32
    return %arg0, %arg1, %c0_i32 : i32, i32, i32
  }
  func.func @transform_2(%arg0: i32, %arg1: i32) -> (i32, i32, i32) {
    %c0_i32 = arith.constant 0 : i32
    %c0_i32_0 = arith.constant 0 : i32
    %c0_i32_1 = arith.constant 0 : i32
    return %arg0, %c0_i32, %c0_i32_0 : i32, i32, i32
  }
  func.func @transform_3(%arg0: i32, %arg1: i32) -> (i32, i32, i32) {
    %c0_i32 = arith.constant 0 : i32
    %c0_i32_0 = arith.constant 0 : i32
    %c0_i32_1 = arith.constant 0 : i32
    return %arg0, %c0_i32, %c0_i32_0 : i32, i32, i32
  }
  func.func @transform_4(%arg0: i32, %arg1: i32) -> (i32, i32) {
    %c0_i32 = arith.constant 0 : i32
    %c0_i32_0 = arith.constant 0 : i32
    %c0_i32_1 = arith.constant 0 : i32
    return %c0_i32, %c0_i32_0 : i32, i32
  }
  func.func @transform_5(%arg0: i32, %arg1: i32) -> (i32, i32) {
    %c0_i32 = arith.constant 0 : i32
    %c0_i32_0 = arith.constant 0 : i32
    %c0_i32_1 = arith.constant 0 : i32
    return %c0_i32, %c0_i32_0 : i32, i32
  }
  func.func @transform_6(%arg0: i32, %arg1: i32) -> (i32, i32) {
    %c0_i32 = arith.constant 0 : i32
    %c0_i32_0 = arith.constant 0 : i32
    %c0_i32_1 = arith.constant 0 : i32
    return %c0_i32, %c0_i32_0 : i32, i32
  }
  func.func @transform_7(%arg0: i32, %arg1: i32) -> (i32, i32) {
    %c0_i32 = arith.constant 0 : i32
    %c0_i32_0 = arith.constant 0 : i32
    %c0_i32_1 = arith.constant 0 : i32
    return %c0_i32, %c0_i32_0 : i32, i32
  }
  func.func @transform_8(%arg0: i32, %arg1: i32) -> (i32, i32) {
    %c0_i32 = arith.constant 0 : i32
    %c0_i32_0 = arith.constant 0 : i32
    %c0_i32_1 = arith.constant 0 : i32
    return %c0_i32, %c0_i32_0 : i32, i32
  }
  func.func @transform_9(%arg0: i32, %arg1: i32) -> (i32, i32, i32) {
    %c0_i32 = arith.constant 0 : i32
    %c0_i32_0 = arith.constant 0 : i32
    return %arg0, %arg1, %c0_i32 : i32, i32, i32
  }
}

</mosaic_0001>

<llo_original>
// kernel: tpu_custom_call.1
$region0: #{tpu_custom_call.1}
  #allocation0 [shape = 'u32[]', space=smem, size = 0x4, offset = 0x4, fixed_abs, tag = 'smem constant byte address 0x4 - core index']
  #allocation1 [shape = 'u32[144,128]{1,0:T(1,128)}', space=vmem, size = 0x12000, scoped, tag = 'internal scratch']
  %s0 = inlined_call_operand.vmem [shape: f32[2,16,5], index: 0, kind: input, shape index: {}]
  %s1 = inlined_call_operand.vmem [shape: f32[2,16,8], index: 1, kind: input, shape index: {}]
  %s2 = inlined_call_operand.vmem [shape: f32[2,5,128], index: 2, kind: input, shape index: {}]
  %s3 = inlined_call_operand.vmem [shape: f32[2,128,8], index: 3, kind: input, shape index: {}]
  %s4 = inlined_call_operand.vmem [shape: f32[8,32], index: 4, kind: input, shape index: {}]
  %s5 = inlined_call_operand.vmem [shape: f32[8,32], index: 5, kind: input, shape index: {}]
  %s6 = inlined_call_operand.vmem [shape: f32[1,32], index: 6, kind: input, shape index: {}]
  %s7 = inlined_call_operand.vmem [shape: f32[32,128], index: 7, kind: input, shape index: {}]
  %s8 = inlined_call_operand.vmem [shape: f32[1,128], index: 8, kind: input, shape index: {}]
  %s9 = inlined_call_operand.hbm [shape: f32[2,16,128], index: 9, kind: output, shape index: {}]
  %s10 = sld [smem:[#allocation0]]
  $region69: #{tpu_custom_call.1} parent=0
    _
  %s12 = ssub.s32 1, %s10
  %s13 = scalar_select 0, %s12, %s10
  $region1: #{tpu_custom_call.1} parent=0
    #allocation2 [shape = 'u8[16384]{0}', space=vmem, size = 0x4000, scoped, tag = 'output window, operand 0']
    #allocation3 [shape = 's32[2]{0}', space=sflag, size = 0x8, scoped, tag = 'scoped memory for tpu_custom_call.1']
    %14 = vsyncpa [#allocation3], 0
    %s15 = scalar_lea.sflag [#allocation3], 1
    %16 = vsyncpa %s15, 0
    loop: start=0, step=1, limit=4
    $region2: #{tpu_custom_call.1} parent=1 // loop_pre_header
      _
    $region3: #{tpu_custom_call.1} parent=1 // loop_header
      %s18 = sphi 0, %s22
      %p19 = scmp.ge.s32.totalorder %s18, 4
      %s25 = sphi 0, %s37
      %s26 = sphi 0, %s33
      %s27 = sphi 0, %s25
      %s28 = sphi 0, %s26
      %s29 = sphi 0, %s27
      %s30 = sphi 0, %s28
      %s42 = sphi 0, %s44
      %s45 = sphi 0, %s42
      %s46 = sphi 0, %s45
      %s62 = sphi 0, %s46
      %s70 = sphi 0, %s72
      %s73 = sphi 0, %s70
      %s74 = sphi 0, %s73
      %s90 = sphi 0, %s74
      %s96 = sphi 0, %s98
      %s99 = sphi 0, %s96
      %s100 = sphi 0, %s99
      %s116 = sphi 0, %s100
      %s122 = sphi 0, %s124
      %s125 = sphi 0, %s122
      %s126 = sphi 0, %s125
      %s142 = sphi 0, %s126
      %s146 = sphi 0, %s146
      %s148 = sphi 0, %s146
      %s149 = sphi 0, %s148
      %s163 = sphi 0, %s149
      %s167 = sphi 0, %s167
      %s169 = sphi 0, %s167
      %s170 = sphi 0, %s169
      %s184 = sphi 0, %s170
      %s188 = sphi 0, %s188
      %s190 = sphi 0, %s188
      %s191 = sphi 0, %s190
      %s205 = sphi 0, %s191
      %s209 = sphi 0, %s209
      %s211 = sphi 0, %s209
      %s212 = sphi 0, %s211
      %s226 = sphi 0, %s212
      %s230 = sphi 0, %s230
      %s232 = sphi 0, %s230
      %s233 = sphi 0, %s232
      %s247 = sphi 0, %s233
      %s255 = sphi 0, %s257
      %s258 = sphi 0, %s255
      %s259 = sphi 0, %s258
      %s275 = sphi 0, %s259
    $region4: #{tpu_custom_call.1} parent=1 // loop_header_branch
      %21 = sbr.rel (%p19) target = $region8
    $region5: #{tpu_custom_call.1} parent=1 // loop_body
      %s23 = ssub.s32 %s18, 1
      %s24 = ssub.s32 %s18, 2
      %s31 = sadd.s32 1, %s26
      %p32 = scmp.ge.s32.totalorder %s31, 1
      %s33 = scalar_select %p32, 0, %s31
      %s34 = sadd.s32 1, %s25
      %s35 = scalar_select %p32, %s34, %s25
      %p36 = scmp.ge.s32.totalorder %s35, 2
      %s37 = scalar_select %p36, 0, %s35
      %s38 = ssub.s32 %s25, %s37
      %s39 = ssub.s32 %s26, %s33
      %s40 = sor.u32 %s38, %s39
      %p41 = scmp.eq.s32.totalorder %s40, 0
      %s43 = sadd.s32 %s42, 1
      %s44 = scalar_select %p41, %s42, %s43
      %p47 = pneg %p41
      %p48 = scmp.eq.s32.totalorder %s18, 1
      %p49 = por %p47, %p48
      %p50 = scmp.ne.s32.totalorder %s42, %s45
      %p51 = scmp.eq.s32.totalorder %s18, 0
      %p52 = por %p50, %p51
      %p53 = scmp.ne.s32.totalorder %s42, %s45
      %p54 = scmp.eq.s32.totalorder %s23, 1
      %p55 = por %p53, %p54
      %p56 = scmp.ne.s32.totalorder %s45, %s46
      %p57 = scmp.eq.s32.totalorder %s23, 0
      %p58 = por %p56, %p57
      %p59 = scmp.ne.s32.totalorder %s45, %s46
      %p60 = scmp.eq.s32.totalorder %s24, 1
      %p61 = por %p59, %p60
      %p63 = scmp.ne.s32.totalorder %s46, %s62
      %p64 = scmp.eq.s32.totalorder %s24, 0
      %p65 = por %p63, %p64
      %s66 = ssub.s32 %s25, %s37
      %s67 = ssub.s32 %s26, %s33
      %s68 = sor.u32 %s66, %s67
      %p69 = scmp.eq.s32.totalorder %s68, 0
      %s71 = sadd.s32 %s70, 1
      %s72 = scalar_select %p69, %s70, %s71
      %p75 = pneg %p69
      %p76 = scmp.eq.s32.totalorder %s18, 1
      %p77 = por %p75, %p76
      %p78 = scmp.ne.s32.totalorder %s70, %s73
      %p79 = scmp.eq.s32.totalorder %s18, 0
      %p80 = por %p78, %p79
      %p81 = scmp.ne.s32.totalorder %s70, %s73
      %p82 = scmp.eq.s32.totalorder %s23, 1
      %p83 = por %p81, %p82
      %p84 = scmp.ne.s32.totalorder %s73, %s74
      %p85 = scmp.eq.s32.totalorder %s23, 0
      %p86 = por %p84, %p85
      %p87 = scmp.ne.s32.totalorder %s73, %s74
      %p88 = scmp.eq.s32.totalorder %s24, 1
      %p89 = por %p87, %p88
      %p91 = scmp.ne.s32.totalorder %s74, %s90
      %p92 = scmp.eq.s32.totalorder %s24, 0
      %p93 = por %p91, %p92
      %s94 = ssub.s32 %s25, %s37
      %p95 = scmp.eq.s32.totalorder %s94, 0
      %s97 = sadd.s32 %s96, 1
      %s98 = scalar_select %p95, %s96, %s97
      %p101 = pneg %p95
      %p102 = scmp.eq.s32.totalorder %s18, 1
      %p103 = por %p101, %p102
      %p104 = scmp.ne.s32.totalorder %s96, %s99
      %p105 = scmp.eq.s32.totalorder %s18, 0
      %p106 = por %p104, %p105
      %p107 = scmp.ne.s32.totalorder %s96, %s99
      %p108 = scmp.eq.s32.totalorder %s23, 1
      %p109 = por %p107, %p108
      %p110 = scmp.ne.s32.totalorder %s99, %s100
      %p111 = scmp.eq.s32.totalorder %s23, 0
      %p112 = por %p110, %p111
      %p113 = scmp.ne.s32.totalorder %s99, %s100
      %p114 = scmp.eq.s32.totalorder %s24, 1
      %p115 = por %p113, %p114
      %p117 = scmp.ne.s32.totalorder %s100, %s116
      %p118 = scmp.eq.s32.totalorder %s24, 0
      %p119 = por %p117, %p118
      %s120 = ssub.s32 %s25, %s37
      %p121 = scmp.eq.s32.totalorder %s120, 0
      %s123 = sadd.s32 %s122, 1
      %s124 = scalar_select %p121, %s122, %s123
      %p127 = pneg %p121
      %p128 = scmp.eq.s32.totalorder %s18, 1
      %p129 = por %p127, %p128
      %p130 = scmp.ne.s32.totalorder %s122, %s125
      %p131 = scmp.eq.s32.totalorder %s18, 0
      %p132 = por %p130, %p131
      %p133 = scmp.ne.s32.totalorder %s122, %s125
      %p134 = scmp.eq.s32.totalorder %s23, 1
      %p135 = por %p133, %p134
      %p136 = scmp.ne.s32.totalorder %s125, %s126
      %p137 = scmp.eq.s32.totalorder %s23, 0
      %p138 = por %p136, %p137
      %p139 = scmp.ne.s32.totalorder %s125, %s126
      %p140 = scmp.eq.s32.totalorder %s24, 1
      %p141 = por %p139, %p140
      %p143 = scmp.ne.s32.totalorder %s126, %s142
      %p144 = scmp.eq.s32.totalorder %s24, 0
      %p145 = por %p143, %p144
      %s147 = sadd.s32 %s146, 1
      %p150 = scmp.eq.s32.totalorder %s18, 1
      %p151 = scmp.ne.s32.totalorder %s146, %s148
      %p152 = scmp.eq.s32.totalorder %s18, 0
      %p153 = por %p151, %p152
      %p154 = scmp.ne.s32.totalorder %s146, %s148
      %p155 = scmp.eq.s32.totalorder %s23, 1
      %p156 = por %p154, %p155
      %p157 = scmp.ne.s32.totalorder %s148, %s149
      %p158 = scmp.eq.s32.totalorder %s23, 0
      %p159 = por %p157, %p158
      %p160 = scmp.ne.s32.totalorder %s148, %s149
      %p161 = scmp.eq.s32.totalorder %s24, 1
      %p162 = por %p160, %p161
      %p164 = scmp.ne.s32.totalorder %s149, %s163
      %p165 = scmp.eq.s32.totalorder %s24, 0
      %p166 = por %p164, %p165
      %s168 = sadd.s32 %s167, 1
      %p171 = scmp.eq.s32.totalorder %s18, 1
      %p172 = scmp.ne.s32.totalorder %s167, %s169
      %p173 = scmp.eq.s32.totalorder %s18, 0
      %p174 = por %p172, %p173
      %p175 = scmp.ne.s32.totalorder %s167, %s169
      %p176 = scmp.eq.s32.totalorder %s23, 1
      %p177 = por %p175, %p176
      %p178 = scmp.ne.s32.totalorder %s169, %s170
      %p179 = scmp.eq.s32.totalorder %s23, 0
      %p180 = por %p178, %p179
      %p181 = scmp.ne.s32.totalorder %s169, %s170
      %p182 = scmp.eq.s32.totalorder %s24, 1
      %p183 = por %p181, %p182
      %p185 = scmp.ne.s32.totalorder %s170, %s184
      %p186 = scmp.eq.s32.totalorder %s24, 0
      %p187 = por %p185, %p186
      %s189 = sadd.s32 %s188, 1
      %p192 = scmp.eq.s32.totalorder %s18, 1
      %p193 = scmp.ne.s32.totalorder %s188, %s190
      %p194 = scmp.eq.s32.totalorder %s18, 0
      %p195 = por %p193, %p194
      %p196 = scmp.ne.s32.totalorder %s188, %s190
      %p197 = scmp.eq.s32.totalorder %s23, 1
      %p198 = por %p196, %p197
      %p199 = scmp.ne.s32.totalorder %s190, %s191
      %p200 = scmp.eq.s32.totalorder %s23, 0
      %p201 = por %p199, %p200
      %p202 = scmp.ne.s32.totalorder %s190, %s191
      %p203 = scmp.eq.s32.totalorder %s24, 1
      %p204 = por %p202, %p203
      %p206 = scmp.ne.s32.totalorder %s191, %s205
      %p207 = scmp.eq.s32.totalorder %s24, 0
      %p208 = por %p206, %p207
      %s210 = sadd.s32 %s209, 1
      %p213 = scmp.eq.s32.totalorder %s18, 1
      %p214 = scmp.ne.s32.totalorder %s209, %s211
      %p215 = scmp.eq.s32.totalorder %s18, 0
      %p216 = por %p214, %p215
      %p217 = scmp.ne.s32.totalorder %s209, %s211
      %p218 = scmp.eq.s32.totalorder %s23, 1
      %p219 = por %p217, %p218
      %p220 = scmp.ne.s32.totalorder %s211, %s212
      %p221 = scmp.eq.s32.totalorder %s23, 0
      %p222 = por %p220, %p221
      %p223 = scmp.ne.s32.totalorder %s211, %s212
      %p224 = scmp.eq.s32.totalorder %s24, 1
      %p225 = por %p223, %p224
      %p227 = scmp.ne.s32.totalorder %s212, %s226
      %p228 = scmp.eq.s32.totalorder %s24, 0
      %p229 = por %p227, %p228
      %s231 = sadd.s32 %s230, 1
      %p234 = scmp.eq.s32.totalorder %s18, 1
      %p235 = scmp.ne.s32.totalorder %s230, %s232
      %p236 = scmp.eq.s32.totalorder %s18, 0
      %p237 = por %p235, %p236
      %p238 = scmp.ne.s32.totalorder %s230, %s232
      %p239 = scmp.eq.s32.totalorder %s23, 1
      %p240 = por %p238, %p239
      %p241 = scmp.ne.s32.totalorder %s232, %s233
      %p242 = scmp.eq.s32.totalorder %s23, 0
      %p243 = por %p241, %p242
      %p244 = scmp.ne.s32.totalorder %s232, %s233
      %p245 = scmp.eq.s32.totalorder %s24, 1
      %p246 = por %p244, %p245
      %p248 = scmp.ne.s32.totalorder %s233, %s247
      %p249 = scmp.eq.s32.totalorder %s24, 0
      %p250 = por %p248, %p249
      %s251 = ssub.s32 %s25, %s37
      %s252 = ssub.s32 %s26, %s33
      %s253 = sor.u32 %s251, %s252
      %p254 = scmp.eq.s32.totalorder %s253, 0
      %s256 = sadd.s32 %s255, 1
      %s257 = scalar_select %p254, %s255, %s256
      %p260 = pneg %p254
      %p261 = scmp.eq.s32.totalorder %s18, 1
      %p262 = por %p260, %p261
      %p263 = scmp.ne.s32.totalorder %s255, %s258
      %p264 = scmp.eq.s32.totalorder %s18, 0
      %p265 = por %p263, %p264
      %p266 = scmp.ne.s32.totalorder %s255, %s258
      %p267 = scmp.eq.s32.totalorder %s23, 1
      %p268 = por %p266, %p267
      %p269 = scmp.ne.s32.totalorder %s258, %s259
      %p270 = scmp.eq.s32.totalorder %s23, 0
      %p271 = por %p269, %p270
      %p272 = scmp.ne.s32.totalorder %s258, %s259
      %p273 = scmp.eq.s32.totalorder %s24, 1
      %p274 = por %p272, %p273
      %p276 = scmp.ne.s32.totalorder %s259, %s275
      %p277 = scmp.eq.s32.totalorder %s24, 0
      %p278 = por %p276, %p277
      %p279 = scmp.le.s32.totalorder 1, %s18
      %p280 = scmp.lt.s32.totalorder %s18, 3
      %p281 = pnand %p279, %p280
      %p282 = pneg %p281
      // Predicated region
      $region9: #{tpu_custom_call.1} parent=5 // pred_check
        _
      $region10: #{tpu_custom_call.1} parent=5 // pred_check_branch
        %284 = sbr.rel (%p281) target = $region12
      $region11: #{tpu_custom_call.1} parent=5 // pred_region
        %s285 = ssub.s32 %s18, 1
        // Predicated region
        $region13: #{tpu_custom_call.1} parent=11 // pred_check
          %p286 = pneg %p159
        $region14: #{tpu_custom_call.1} parent=11 // pred_check_branch
          %288 = sbr.rel (%p286) target = $region16
        $region15: #{tpu_custom_call.1} parent=11 // pred_region
          _
        $region16: #{tpu_custom_call.1} parent=11 // pred_fallthru
          _
        // Predicated region
        $region17: #{tpu_custom_call.1} parent=11 // pred_check
          %p289 = pneg %p180
        $region18: #{tpu_custom_call.1} parent=11 // pred_check_branch
          %291 = sbr.rel (%p289) target = $region20
        $region19: #{tpu_custom_call.1} parent=11 // pred_region
          _
        $region20: #{tpu_custom_call.1} parent=11 // pred_fallthru
          _
        // Predicated region
        $region21: #{tpu_custom_call.1} parent=11 // pred_check
          %p292 = pneg %p201
        $region22: #{tpu_custom_call.1} parent=11 // pred_check_branch
          %294 = sbr.rel (%p292) target = $region24
        $region23: #{tpu_custom_call.1} parent=11 // pred_region
          _
        $region24: #{tpu_custom_call.1} parent=11 // pred_fallthru
          _
        // Predicated region
        $region25: #{tpu_custom_call.1} parent=11 // pred_check
          %p295 = pneg %p222
        $region26: #{tpu_custom_call.1} parent=11 // pred_check_branch
          %297 = sbr.rel (%p295) target = $region28
        $region27: #{tpu_custom_call.1} parent=11 // pred_region
          _
        $region28: #{tpu_custom_call.1} parent=11 // pred_fallthru
          _
        // Predicated region
        $region29: #{tpu_custom_call.1} parent=11 // pred_check
          %p298 = pneg %p243
        $region30: #{tpu_custom_call.1} parent=11 // pred_check_branch
          %300 = sbr.rel (%p298) target = $region32
        $region31: #{tpu_custom_call.1} parent=11 // pred_region
          _
        $region32: #{tpu_custom_call.1} parent=11 // pred_fallthru
          _
      $region12: #{tpu_custom_call.1} parent=5 // pred_fallthru
        _
      %p301 = scmp.lt.s32.totalorder %s18, 2
      // Predicated region
      $region33: #{tpu_custom_call.1} parent=5 // pred_check
        %p302 = pneg %p301
      $region34: #{tpu_custom_call.1} parent=5 // pred_check_branch
        %304 = sbr.rel (%p302) target = $region36
      $region35: #{tpu_custom_call.1} parent=5 // pred_region
        // Predicated region
        $region37: #{tpu_custom_call.1} parent=35 // pred_check
          %p305 = pneg %p52
        $region38: #{tpu_custom_call.1} parent=35 // pred_check_branch
          %307 = sbr.rel (%p305) target = $region40
        $region39: #{tpu_custom_call.1} parent=35 // pred_region
          %s308 = smul.u32 2, %s26
          %p309 = scmp.lt.s32.totalorder %s25, 1
          %s310 = scalar_select %p309, %s25, 1
          %p311 = scmp.lt.s32.totalorder %s308, 1
          %s312 = scalar_select %p311, %s308, 1
          %s313 = smul.addr %s310, 2
          %s314 = sadd.s32 %s312, %s313
          %s315 = smul.addr %s314, 8
          %s316 = scalar_lea.vmem %s0, %s315
          %s317 = smul.u32 2, %s26
        $region40: #{tpu_custom_call.1} parent=35 // pred_fallthru
          _
        // Predicated region
        $region41: #{tpu_custom_call.1} parent=35 // pred_check
          %p318 = pneg %p80
        $region42: #{tpu_custom_call.1} parent=35 // pred_check_branch
          %320 = sbr.rel (%p318) target = $region44
        $region43: #{tpu_custom_call.1} parent=35 // pred_region
          %s321 = smul.u32 2, %s26
          %p322 = scmp.lt.s32.totalorder %s25, 1
          %s323 = scalar_select %p322, %s25, 1
          %p324 = scmp.lt.s32.totalorder %s321, 1
          %s325 = scalar_select %p324, %s321, 1
          %s326 = smul.addr %s323, 2
          %s327 = sadd.s32 %s325, %s326
          %s328 = smul.addr %s327, 8
          %s329 = scalar_lea.vmem %s1, %s328
          %s330 = smul.u32 2, %s26
        $region44: #{tpu_custom_call.1} parent=35 // pred_fallthru
          _
        // Predicated region
        $region45: #{tpu_custom_call.1} parent=35 // pred_check
          %p331 = pneg %p106
        $region46: #{tpu_custom_call.1} parent=35 // pred_check_branch
          %333 = sbr.rel (%p331) target = $region48
        $region47: #{tpu_custom_call.1} parent=35 // pred_region
          %p334 = scmp.lt.s32.totalorder %s25, 1
          %s335 = scalar_select %p334, %s25, 1
          %s336 = smul.addr %s335, 8
          %s337 = scalar_lea.vmem %s2, %s336
        $region48: #{tpu_custom_call.1} parent=35 // pred_fallthru
          _
        // Predicated region
        $region49: #{tpu_custom_call.1} parent=35 // pred_check
          %p338 = pneg %p132
        $region50: #{tpu_custom_call.1} parent=35 // pred_check_branch
          %340 = sbr.rel (%p338) target = $region52
        $region51: #{tpu_custom_call.1} parent=35 // pred_region
          %p341 = scmp.lt.s32.totalorder %s25, 1
          %s342 = scalar_select %p341, %s25, 1
          %s343 = smul.addr %s342, 16
          %s344 = smul.addr %s343, 8
          %s345 = scalar_lea.vmem %s3, %s344
        $region52: #{tpu_custom_call.1} parent=35 // pred_fallthru
          _
      $region36: #{tpu_custom_call.1} parent=5 // pred_fallthru
        _
      %p346 = scmp.le.s32.totalorder 1, %s18
      %p347 = scmp.lt.s32.totalorder %s18, 3
      %p348 = pnand %p346, %p347
      %p349 = pneg %p348
      // Predicated region
      $region53: #{tpu_custom_call.1} parent=5 // pred_check
        _
      $region54: #{tpu_custom_call.1} parent=5 // pred_check_branch
        %351 = sbr.rel (%p348) target = $region56
      $region55: #{tpu_custom_call.1} parent=5 // pred_region
        %s352 = ssub.s32 %s18, 1
        %s353 = smul.u32 2, %s28
        %p354 = scmp.lt.s32.totalorder %s27, 1
        %s355 = scalar_select %p354, %s27, 1
        %p356 = scmp.lt.s32.totalorder %s353, 1
        %s357 = scalar_select %p356, %s353, 1
        %s358 = smul.addr %s355, 2
        %s359 = sadd.s32 %s357, %s358
        %s360 = smul.addr %s359, 8
        %s361 = scalar_lea.vmem %s0, %s360
        %p362 = pneg %p58
        %p363 = pneg %p55
        %s364 = smul.u32 2, %s28
        %p365 = scmp.lt.s32.totalorder %s27, 1
        %s366 = scalar_select %p365, %s27, 1
        %p367 = scmp.lt.s32.totalorder %s364, 1
        %s368 = scalar_select %p367, %s364, 1
        %s369 = smul.addr %s366, 2
        %s370 = sadd.s32 %s368, %s369
        %s371 = smul.addr %s370, 8
        %s372 = scalar_lea.vmem %s1, %s371
        %p373 = pneg %p86
        %p374 = pneg %p83
        %p375 = scmp.lt.s32.totalorder %s27, 1
        %s376 = scalar_select %p375, %s27, 1
        %s377 = smul.addr %s376, 8
        %s378 = scalar_lea.vmem %s2, %s377
        %p379 = pneg %p112
        %p380 = pneg %p109
        %p381 = scmp.lt.s32.totalorder %s27, 1
        %s382 = scalar_select %p381, %s27, 1
        %s383 = smul.addr %s382, 16
        %s384 = smul.addr %s383, 8
        %s385 = scalar_lea.vmem %s3, %s384
        %p386 = pneg %p138
        %p387 = pneg %p135
        %p388 = pneg %p159
        %p389 = pneg %p156
        %p390 = pneg %p180
        %p391 = pneg %p177
        %p392 = pneg %p201
        %p393 = pneg %p198
        %p394 = pneg %p222
        %p395 = pneg %p219
        %p396 = pneg %p243
        %p397 = pneg %p240
        %p398 = pneg %p271
        %p399 = pneg %p268
        %s400 = sand.u32 %s258, 1
        %s401 = scalar_lea.sflag [#allocation3], %s400
        %s402 = sand.u32 %s258, 1
        %s403 = smul.addr %s402, 16
        %s404 = scalar_lea.vmem [#allocation2], %s403
        %s405 = smul.u32 2, %s28
        %p406 = scmp.lt.s32.totalorder %s27, 1
        %s407 = scalar_select %p406, %s27, 1
        %p408 = scmp.lt.s32.totalorder %s405, 1
        %s409 = scalar_select %p408, %s405, 1
        %s410 = smul.addr %s407, 2
        %s411 = sadd.s32 %s409, %s410
        %s412 = smul.addr %s411, 8
        %s413 = scalar_lea.vmem %s0, %s412
        %s414 = smul.u32 2, %s28
        %s415 = smul.u32 2, %s28
        %p416 = scmp.lt.s32.totalorder %s27, 1
        %s417 = scalar_select %p416, %s27, 1
        %p418 = scmp.lt.s32.totalorder %s415, 1
        %s419 = scalar_select %p418, %s415, 1
        %s420 = smul.addr %s417, 2
        %s421 = sadd.s32 %s419, %s420
        %s422 = smul.addr %s421, 8
        %s423 = scalar_lea.vmem %s1, %s422
        %s424 = smul.u32 2, %s28
        %p425 = scmp.lt.s32.totalorder %s27, 1
        %s426 = scalar_select %p425, %s27, 1
        %s427 = smul.addr %s426, 8
        %s428 = scalar_lea.vmem %s2, %s427
        %p429 = scmp.lt.s32.totalorder %s27, 1
        %s430 = scalar_select %p429, %s27, 1
        %s431 = smul.addr %s430, 16
        %s432 = smul.addr %s431, 8
        %s433 = scalar_lea.vmem %s3, %s432
        %s434 = smul.u32 2, %s28
        %v435 = vld [vmem:[%s413] sm:$0xff]
        %v436 = vld [vmem:[%s413 + $0x8] sm:$0xff]
        %v437 = vld [vmem:[%s428] sm:$0x1f]
        %vm438 = vcmask 39936
        %v440 = vsel %vm438, %v435, 0
        %v443 = vsel %vm438, %v436, 0
        %vm445 = vcmask 1044480
        %v447 = vsel %vm445, %v437, 0
        %449 = vmatprep.subr.mxu0 0.0
        %450 = vmatpush1.msra.mxu0 %v447
        %451 = vmatprep.subr.mxu0 0.0
        %452 = vmatpush1.msra.mxu0 0.0
        %453 = vmatprep.subr.mxu0 0.0
        %454 = vmatpush1.msra.mxu0 0.0
        %455 = vmatprep.subr.mxu0 0.0
        %456 = vmatpush1.msra.mxu0 0.0
        %457 = vmatprep.subr.mxu0 0.0
        %458 = vmatpush1.msra.mxu0 0.0
        %459 = vmatprep.subr.mxu0 0.0
        %460 = vmatpush1.msra.mxu0 0.0
        %461 = vmatprep.subr.mxu0 0.0
        %462 = vmatpush1.msra.mxu0 0.0
        %463 = vmatprep.subr.mxu0 0.0
        %464 = vmatpush1.msra.mxu0 0.0
        %465 = vmatprep.subr.mxu0 0.0
        %466 = vmatpush1.msra.mxu0 0.0
        %467 = vmatprep.subr.mxu0 0.0
        %468 = vmatpush1.msra.mxu0 0.0
        %469 = vmatprep.subr.mxu0 0.0
        %470 = vmatpush1.msra.mxu0 0.0
        %471 = vmatprep.subr.mxu0 0.0
        %472 = vmatpush1.msra.mxu0 0.0
        %473 = vmatprep.subr.mxu0 0.0
        %474 = vmatpush1.msra.mxu0 0.0
        %475 = vmatprep.subr.mxu0 0.0
        %476 = vmatpush1.msra.mxu0 0.0
        %477 = vmatprep.subr.mxu0 0.0
        %478 = vmatpush1.msra.mxu0 0.0
        %479 = vmatprep.subr.mxu0 0.0
        %480 = vmatpush1.msra.mxu0 0.0
        %481 = vmatprep.subr.mxu0 0.0
        %482 = vmatpush1.msra.mxu0 0.0
        %483 = vmatprep.subr.mxu0 0.0
        %484 = vmatpush1.msra.mxu0 0.0
        %485 = vmatprep.subr.mxu0 0.0
        %486 = vmatpush1.msra.mxu0 0.0
        %487 = vmatprep.subr.mxu0 0.0
        %488 = vmatpush1.msra.mxu0 0.0
        %489 = vmatprep.subr.mxu0 0.0
        %490 = vmatpush1.msra.mxu0 0.0
        %491 = vmatprep.subr.mxu0 0.0
        %492 = vmatpush1.msra.mxu0 0.0
        %493 = vmatprep.subr.mxu0 0.0
        %494 = vmatpush1.msra.mxu0 0.0
        %495 = vmatprep.subr.mxu0 0.0
        %496 = vmatpush1.msra.mxu0 0.0
        %497 = vmatprep.subr.mxu0 0.0
        %498 = vmatpush1.msra.mxu0 0.0
        %499 = vmatprep.subr.mxu0 0.0
        %500 = vmatpush1.msra.mxu0 0.0
        %501 = vmatprep.subr.mxu0 0.0
        %502 = vmatpush1.msra.mxu0 0.0
        %503 = vmatprep.subr.mxu0 0.0
        %504 = vmatpush1.msra.mxu0 0.0
        %505 = vmatprep.subr.mxu0 0.0
        %506 = vmatpush1.msra.mxu0 0.0
        %507 = vmatprep.subr.mxu0 0.0
        %508 = vmatpush1.msra.mxu0 0.0
        %509 = vmatprep.subr.mxu0 0.0
        %510 = vmatpush1.msra.mxu0 0.0
        %511 = vmatprep.subr.mxu0 0.0
        %512 = vmatpush1.msra.mxu0 0.0
        %513 = vmatprep.mubr.f32.mxu0 0.0
        %514 = vmatmul.mubr.f32.gmra.mrb[0].mxu0 %v440
        %v515 = vpop.f32.mrb[0].mxu0
        %v516 = vadd.f32 0.0, %v515
        %v517 = vpop.f32.mrb[0].mxu0
        %518 = vmatprep.mubr.f32.mxu0 0.0
        %519 = vmatmul.mubr.f32.gmra.mrb[0].mxu0 %v443
        %v520 = vpop.f32.mrb[0].mxu0
        %v521 = vadd.f32 0.0, %v520
        %v522 = vpop.f32.mrb[0].mxu0
        %523 = vdwg.mxu0
        %v524 = vmax.f32 %v516, 0.0
        %v525 = vmax.f32 %v521, 0.0
        %v526 = vlaneseq
        %v527 = vand.u32 %v526, 127
        %528 = vmin.xlane.f32.xlu0 %v524
        %v529 = vpop.xlane.xlu0 %528
        %530 = vmin.xlane.f32.xlu0 %v525
        %v531 = vpop.xlane.xlu0 %530
        %vm532 = vcmp.le.f32.partialorder %v524, %v529
        %vm533 = vcmp.le.f32.partialorder %v525, %v531
        %v534 = vsel %vm532, %v527, 128
        %v535 = vsel %vm533, %v527, 128
        %v536 = vand.u32 %v534, 65535
        %v537 = vshra.s32 %v534, 16
        %v538 = vcvt.s32.f32 %v536
        %v539 = vcvt.s32.f32 %v537
        %540 = vmin.xlane.f32.xlu0 %v539
        %v541 = vpop.xlane.xlu0 %540
        %vm542 = vcmp.eq.f32.partialorder %v539, %v541
        %v543 = vsel %vm542, %v538, inf
        %544 = vmin.xlane.f32.xlu0 %v543
        %v545 = vpop.xlane.xlu0 %544
        %v546 = vcvt.f32.s32 %v545
        %v547 = vcvt.f32.s32 %v541
        %v548 = vshll.u32 %v547, 16
        %v549 = vadd.s32 %v548, %v546
        %v550 = vand.u32 %v535, 65535
        %v551 = vshra.s32 %v535, 16
        %v552 = vcvt.s32.f32 %v550
        %v553 = vcvt.s32.f32 %v551
        %554 = vmin.xlane.f32.xlu0 %v553
        %v555 = vpop.xlane.xlu0 %554
        %vm556 = vcmp.eq.f32.partialorder %v553, %v555
        %v557 = vsel %vm556, %v552, inf
        %558 = vmin.xlane.f32.xlu0 %v557
        %v559 = vpop.xlane.xlu0 %558
        %v560 = vcvt.f32.s32 %v559
        %v561 = vcvt.f32.s32 %v555
        %v562 = vshll.u32 %v561, 16
        %v563 = vadd.s32 %v562, %v560
        %vm564 = vcmp.eq.s32.totalorder %v527, %v549
        %vm565 = vcmp.eq.s32.totalorder %v527, %v563
        %vm566 = vcmp.lt.f32.partialorder %v529, 5e+29
        %vm567 = vcmp.lt.f32.partialorder %v531, 5e+29
        %v568 = vmax.f32 %v529, 1e-16
        %v569 = vmax.f32 %v531, 1e-16
        %v570 = vrcp.pop %v568
        %v571 = vrcp.pop %v569
        %v572 = vsel %vm566, 1, 0
        %v573 = vsel %vm567, 1, 0
        %vm574 = vcmp.eq.s32.totalorder %v572, 1
        %vm575 = vcmp.eq.s32.totalorder %v573, 1
        %vm576 = vmand %vm564, %vm574
        %vm577 = vmand %vm565, %vm575
        %v578 = vsel %vm576, %v570, 0.0
        %v579 = vsel %vm577, %v571, 0.0
        %v580 = vsel %vm566, %v570, 0.0
        %v581 = vsel %vm567, %v571, 0.0
        %v582 = vadd.f32 %v580, 0.0
        %v583 = vadd.f32 %v581, 0.0
        %v584 = vsel %vm564, 1e+30, %v524
        %v585 = vsel %vm565, 1e+30, %v525
        %586 = vmin.xlane.f32.xlu0 %v584
        %v587 = vpop.xlane.xlu0 %586
        %588 = vmin.xlane.f32.xlu0 %v585
        %v589 = vpop.xlane.xlu0 %588
        %vm590 = vcmp.le.f32.partialorder %v584, %v587
        %vm591 = vcmp.le.f32.partialorder %v585, %v589
        %v592 = vsel %vm590, %v527, 128
        %v593 = vsel %vm591, %v527, 128
        %v594 = vand.u32 %v592, 65535
        %v595 = vshra.s32 %v592, 16
        %v596 = vcvt.s32.f32 %v594
        %v597 = vcvt.s32.f32 %v595
        %598 = vmin.xlane.f32.xlu0 %v597
        %v599 = vpop.xlane.xlu0 %598
        %vm600 = vcmp.eq.f32.partialorder %v597, %v599
        %v601 = vsel %vm600, %v596, inf
        %602 = vmin.xlane.f32.xlu0 %v601
        %v603 = vpop.xlane.xlu0 %602
        %v604 = vcvt.f32.s32 %v603
        %v605 = vcvt.f32.s32 %v599
        %v606 = vshll.u32 %v605, 16
        %v607 = vadd.s32 %v606, %v604
        %v608 = vand.u32 %v593, 65535
        %v609 = vshra.s32 %v593, 16
        %v610 = vcvt.s32.f32 %v608
        %v611 = vcvt.s32.f32 %v609
        %612 = vmin.xlane.f32.xlu0 %v611
        %v613 = vpop.xlane.xlu0 %612
        %vm614 = vcmp.eq.f32.partialorder %v611, %v613
        %v615 = vsel %vm614, %v610, inf
        %616 = vmin.xlane.f32.xlu0 %v615
        %v617 = vpop.xlane.xlu0 %616
        %v618 = vcvt.f32.s32 %v617
        %v619 = vcvt.f32.s32 %v613
        %v620 = vshll.u32 %v619, 16
        %v621 = vadd.s32 %v620, %v618
        %vm622 = vcmp.eq.s32.totalorder %v527, %v607
        %vm623 = vcmp.eq.s32.totalorder %v527, %v621
        %vm624 = vcmp.lt.f32.partialorder %v587, 5e+29
        %vm625 = vcmp.lt.f32.partialorder %v589, 5e+29
        %v626 = vmax.f32 %v587, 1e-16
        %v627 = vmax.f32 %v589, 1e-16
        %v628 = vrcp.pop %v626
        %v629 = vrcp.pop %v627
        %v630 = vsel %vm624, 1, 0
        %v631 = vsel %vm625, 1, 0
        %vm632 = vcmp.eq.s32.totalorder %v630, 1
        %vm633 = vcmp.eq.s32.totalorder %v631, 1
        %vm634 = vmand %vm622, %vm632
        %vm635 = vmand %vm623, %vm633
        %v636 = vsel %vm634, %v628, %v578
        %v637 = vsel %vm635, %v629, %v579
        %v638 = vsel %vm624, %v628, 0.0
        %v639 = vsel %vm625, %v629, 0.0
        %v640 = vadd.f32 %v582, %v638
        %v641 = vadd.f32 %v583, %v639
        %v642 = vsel %vm622, 1e+30, %v584
        %v643 = vsel %vm623, 1e+30, %v585
        %644 = vmin.xlane.f32.xlu0 %v642
        %v645 = vpop.xlane.xlu0 %644
        %646 = vmin.xlane.f32.xlu0 %v643
        %v647 = vpop.xlane.xlu0 %646
        %vm648 = vcmp.le.f32.partialorder %v642, %v645
        %vm649 = vcmp.le.f32.partialorder %v643, %v647
        %v650 = vsel %vm648, %v527, 128
        %v651 = vsel %vm649, %v527, 128
        %v652 = vand.u32 %v650, 65535
        %v653 = vshra.s32 %v650, 16
        %v654 = vcvt.s32.f32 %v652
        %v655 = vcvt.s32.f32 %v653
        %656 = vmin.xlane.f32.xlu0 %v655
        %v657 = vpop.xlane.xlu0 %656
        %vm658 = vcmp.eq.f32.partialorder %v655, %v657
        %v659 = vsel %vm658, %v654, inf
        %660 = vmin.xlane.f32.xlu0 %v659
        %v661 = vpop.xlane.xlu0 %660
        %v662 = vcvt.f32.s32 %v661
        %v663 = vcvt.f32.s32 %v657
        %v664 = vshll.u32 %v663, 16
        %v665 = vadd.s32 %v664, %v662
        %v666 = vand.u32 %v651, 65535
        %v667 = vshra.s32 %v651, 16
        %v668 = vcvt.s32.f32 %v666
        %v669 = vcvt.s32.f32 %v667
        %670 = vmin.xlane.f32.xlu0 %v669
        %v671 = vpop.xlane.xlu0 %670
        %vm672 = vcmp.eq.f32.partialorder %v669, %v671
        %v673 = vsel %vm672, %v668, inf
        %674 = vmin.xlane.f32.xlu0 %v673
        %v675 = vpop.xlane.xlu0 %674
        %v676 = vcvt.f32.s32 %v675
        %v677 = vcvt.f32.s32 %v671
        %v678 = vshll.u32 %v677, 16
        %v679 = vadd.s32 %v678, %v676
        %vm680 = vcmp.eq.s32.totalorder %v527, %v665
        %vm681 = vcmp.eq.s32.totalorder %v527, %v679
        %vm682 = vcmp.lt.f32.partialorder %v645, 5e+29
        %vm683 = vcmp.lt.f32.partialorder %v647, 5e+29
        %v684 = vmax.f32 %v645, 1e-16
        %v685 = vmax.f32 %v647, 1e-16
        %v686 = vrcp.pop %v684
        %v687 = vrcp.pop %v685
        %v688 = vsel %vm682, 1, 0
        %v689 = vsel %vm683, 1, 0
        %vm690 = vcmp.eq.s32.totalorder %v688, 1
        %vm691 = vcmp.eq.s32.totalorder %v689, 1
        %vm692 = vmand %vm680, %vm690
        %vm693 = vmand %vm681, %vm691
        %v694 = vsel %vm692, %v686, %v636
        %v695 = vsel %vm693, %v687, %v637
        %v696 = vsel %vm682, %v686, 0.0
        %v697 = vsel %vm683, %v687, 0.0
        %v698 = vadd.f32 %v640, %v696
        %v699 = vadd.f32 %v641, %v697
        %v700 = vld [vmem:[%s433] sm:$0xff]
        %v701 = vld [vmem:[%s433 + $0x8] sm:$0xff]
        %v702 = vld [vmem:[%s433 + $0x10] sm:$0xff]
        %v703 = vld [vmem:[%s433 + $0x18] sm:$0xff]
        %v704 = vld [vmem:[%s433 + $0x20] sm:$0xff]
        %v705 = vld [vmem:[%s433 + $0x28] sm:$0xff]
        %v706 = vld [vmem:[%s433 + $0x30] sm:$0xff]
        %v707 = vld [vmem:[%s433 + $0x38] sm:$0xff]
        %v708 = vld [vmem:[%s433 + $0x40] sm:$0xff]
        %v709 = vld [vmem:[%s433 + $0x48] sm:$0xff]
        %v710 = vld [vmem:[%s433 + $0x50] sm:$0xff]
        %v711 = vld [vmem:[%s433 + $0x58] sm:$0xff]
        %v712 = vld [vmem:[%s433 + $0x60] sm:$0xff]
        %v713 = vld [vmem:[%s433 + $0x68] sm:$0xff]
        %v714 = vld [vmem:[%s433 + $0x70] sm:$0xff]
        %v715 = vld [vmem:[%s433 + $0x78] sm:$0xff]
        %716 = vmatprep.subr.mxu0 0.0
        %717 = vmatpush1.msra.mxu0 %v700
        %718 = vmatprep.subr.mxu0 0.0
        %719 = vmatpush1.msra.mxu0 %v701
        %720 = vmatprep.subr.mxu0 0.0
        %721 = vmatpush1.msra.mxu0 %v702
        %722 = vmatprep.subr.mxu0 0.0
        %723 = vmatpush1.msra.mxu0 %v703
        %724 = vmatprep.subr.mxu0 0.0
        %725 = vmatpush1.msra.mxu0 %v704
        %726 = vmatprep.subr.mxu0 0.0
        %727 = vmatpush1.msra.mxu0 %v705
        %728 = vmatprep.subr.mxu0 0.0
        %729 = vmatpush1.msra.mxu0 %v706
        %730 = vmatprep.subr.mxu0 0.0
        %731 = vmatpush1.msra.mxu0 %v707
        %732 = vmatprep.subr.mxu0 0.0
        %733 = vmatpush1.msra.mxu0 %v708
        %734 = vmatprep.subr.mxu0 0.0
        %735 = vmatpush1.msra.mxu0 %v709
        %736 = vmatprep.subr.mxu0 0.0
        %737 = vmatpush1.msra.mxu0 %v710
        %738 = vmatprep.subr.mxu0 0.0
        %739 = vmatpush1.msra.mxu0 %v711
        %740 = vmatprep.subr.mxu0 0.0
        %741 = vmatpush1.msra.mxu0 %v712
        %742 = vmatprep.subr.mxu0 0.0
        %743 = vmatpush1.msra.mxu0 %v713
        %744 = vmatprep.subr.mxu0 0.0
        %745 = vmatpush1.msra.mxu0 %v714
        %746 = vmatprep.subr.mxu0 0.0
        %747 = vmatpush1.msra.mxu0 %v715
        %748 = vmatprep.subr.mxu0 0.0
        %749 = vmatpush1.msra.mxu0 0.0
        %750 = vmatprep.subr.mxu0 0.0
        %751 = vmatpush1.msra.mxu0 0.0
        %752 = vmatprep.subr.mxu0 0.0
        %753 = vmatpush1.msra.mxu0 0.0
        %754 = vmatprep.subr.mxu0 0.0
        %755 = vmatpush1.msra.mxu0 0.0
        %756 = vmatprep.subr.mxu0 0.0
        %757 = vmatpush1.msra.mxu0 0.0
        %758 = vmatprep.subr.mxu0 0.0
        %759 = vmatpush1.msra.mxu0 0.0
        %760 = vmatprep.subr.mxu0 0.0
        %761 = vmatpush1.msra.mxu0 0.0
        %762 = vmatprep.subr.mxu0 0.0
        %763 = vmatpush1.msra.mxu0 0.0
        %764 = vmatprep.subr.mxu0 0.0
        %765 = vmatpush1.msra.mxu0 0.0
        %766 = vmatprep.subr.mxu0 0.0
        %767 = vmatpush1.msra.mxu0 0.0
        %768 = vmatprep.subr.mxu0 0.0
        %769 = vmatpush1.msra.mxu0 0.0
        %770 = vmatprep.subr.mxu0 0.0
        %771 = vmatpush1.msra.mxu0 0.0
        %772 = vmatprep.subr.mxu0 0.0
        %773 = vmatpush1.msra.mxu0 0.0
        %774 = vmatprep.subr.mxu0 0.0
        %775 = vmatpush1.msra.mxu0 0.0
        %776 = vmatprep.subr.mxu0 0.0
        %777 = vmatpush1.msra.mxu0 0.0
        %778 = vmatprep.subr.mxu0 0.0
        %779 = vmatpush1.msra.mxu0 0.0
        %780 = vmatprep.mubr.f32.mxu0 0.0
        %781 = vmatmul.mubr.f32.gmra.mrb[0].mxu0 %v694
        %v782 = vpop.f32.mrb[0].mxu0
        %v783 = vadd.f32 0.0, %v782
        %v784 = vpop.f32.mrb[0].mxu0
        %785 = vmatprep.mubr.f32.mxu0 0.0
        %786 = vmatmul.mubr.f32.gmra.mrb[0].mxu0 %v695
        %v787 = vpop.f32.mrb[0].mxu0
        %v788 = vadd.f32 0.0, %v787
        %v789 = vpop.f32.mrb[0].mxu0
        %790 = vdwg.mxu0
        %v791 = vrcp.pop %v698
        %v792 = vrcp.pop %v699
        %v793 = vmul.f32 %v783, %v791
        %v794 = vmul.f32 %v788, %v792
        %v795 = vld [vmem:[%s4] sm:$0xff]
        %v796 = vld [vmem:[%s423] sm:$0xff]
        %v797 = vld [vmem:[%s423 + $0x8] sm:$0xff]
        %v798 = vld [vmem:[%s5] sm:$0xff]
        %vm799 = vcmask 64512
        %v801 = vsel %vm799, %v796, 0
        %v804 = vsel %vm799, %v797, 0
        %806 = vmatprep.subr.mxu0 0.0
        %807 = vmatpush1.msra.mxu0 %v798
        %808 = vmatprep.subr.mxu0 0.0
        %809 = vmatpush1.msra.mxu0 0.0
        %810 = vmatprep.subr.mxu0 0.0
        %811 = vmatpush1.msra.mxu0 0.0
        %812 = vmatprep.subr.mxu0 0.0
        %813 = vmatpush1.msra.mxu0 0.0
        %814 = vmatprep.subr.mxu0 0.0
        %815 = vmatpush1.msra.mxu0 0.0
        %816 = vmatprep.subr.mxu0 0.0
        %817 = vmatpush1.msra.mxu0 0.0
        %818 = vmatprep.subr.mxu0 0.0
        %819 = vmatpush1.msra.mxu0 0.0
        %820 = vmatprep.subr.mxu0 0.0
        %821 = vmatpush1.msra.mxu0 0.0
        %822 = vmatprep.subr.mxu0 0.0
        %823 = vmatpush1.msra.mxu0 0.0
        %824 = vmatprep.subr.mxu0 0.0
        %825 = vmatpush1.msra.mxu0 0.0
        %826 = vmatprep.subr.mxu0 0.0
        %827 = vmatpush1.msra.mxu0 0.0
        %828 = vmatprep.subr.mxu0 0.0
        %829 = vmatpush1.msra.mxu0 0.0
        %830 = vmatprep.subr.mxu0 0.0
        %831 = vmatpush1.msra.mxu0 0.0
        %832 = vmatprep.subr.mxu0 0.0
        %833 = vmatpush1.msra.mxu0 0.0
        %834 = vmatprep.subr.mxu0 0.0
        %835 = vmatpush1.msra.mxu0 0.0
        %836 = vmatprep.subr.mxu0 0.0
        %837 = vmatpush1.msra.mxu0 0.0
        %838 = vmatprep.subr.mxu0 0.0
        %839 = vmatpush1.msra.mxu0 0.0
        %840 = vmatprep.subr.mxu0 0.0
        %841 = vmatpush1.msra.mxu0 0.0
        %842 = vmatprep.subr.mxu0 0.0
        %843 = vmatpush1.msra.mxu0 0.0
        %844 = vmatprep.subr.mxu0 0.0
        %845 = vmatpush1.msra.mxu0 0.0
        %846 = vmatprep.subr.mxu0 0.0
        %847 = vmatpush1.msra.mxu0 0.0
        %848 = vmatprep.subr.mxu0 0.0
        %849 = vmatpush1.msra.mxu0 0.0
        %850 = vmatprep.subr.mxu0 0.0
        %851 = vmatpush1.msra.mxu0 0.0
        %852 = vmatprep.subr.mxu0 0.0
        %853 = vmatpush1.msra.mxu0 0.0
        %854 = vmatprep.subr.mxu0 0.0
        %855 = vmatpush1.msra.mxu0 0.0
        %856 = vmatprep.subr.mxu0 0.0
        %857 = vmatpush1.msra.mxu0 0.0
        %858 = vmatprep.subr.mxu0 0.0
        %859 = vmatpush1.msra.mxu0 0.0
        %860 = vmatprep.subr.mxu0 0.0
        %861 = vmatpush1.msra.mxu0 0.0
        %862 = vmatprep.subr.mxu0 0.0
        %863 = vmatpush1.msra.mxu0 0.0
        %864 = vmatprep.subr.mxu0 0.0
        %865 = vmatpush1.msra.mxu0 0.0
        %866 = vmatprep.subr.mxu0 0.0
        %867 = vmatpush1.msra.mxu0 0.0
        %868 = vmatprep.subr.mxu0 0.0
        %869 = vmatpush1.msra.mxu0 0.0
        %870 = vmatprep.mubr.f32.mxu0 0.0
        %871 = vmatmul.mubr.f32.gmra.mrb[0].mxu0 %v801
        %v872 = vpop.f32.mrb[0].mxu0
        %v873 = vadd.f32 0.0, %v872
        %v874 = vpop.f32.mrb[0].mxu0
        %875 = vmatprep.mubr.f32.mxu0 0.0
        %876 = vmatmul.mubr.f32.gmra.mrb[0].mxu0 %v804
        %v877 = vpop.f32.mrb[0].mxu0
        %v878 = vadd.f32 0.0, %v877
        %v879 = vpop.f32.mrb[0].mxu0
        %880 = vdwg.mxu0
        %v882 = vsel %vm799, %v793, 0
        %v885 = vsel %vm799, %v794, 0
        %887 = vmatprep.subr.mxu0 0.0
        %888 = vmatpush1.msra.mxu0 %v795
        %889 = vmatprep.subr.mxu0 0.0
        %890 = vmatpush1.msra.mxu0 0.0
        %891 = vmatprep.subr.mxu0 0.0
        %892 = vmatpush1.msra.mxu0 0.0
        %893 = vmatprep.subr.mxu0 0.0
        %894 = vmatpush1.msra.mxu0 0.0
        %895 = vmatprep.subr.mxu0 0.0
        %896 = vmatpush1.msra.mxu0 0.0
        %897 = vmatprep.subr.mxu0 0.0
        %898 = vmatpush1.msra.mxu0 0.0
        %899 = vmatprep.subr.mxu0 0.0
        %900 = vmatpush1.msra.mxu0 0.0
        %901 = vmatprep.subr.mxu0 0.0
        %902 = vmatpush1.msra.mxu0 0.0
        %903 = vmatprep.subr.mxu0 0.0
        %904 = vmatpush1.msra.mxu0 0.0
        %905 = vmatprep.subr.mxu0 0.0
        %906 = vmatpush1.msra.mxu0 0.0
        %907 = vmatprep.subr.mxu0 0.0
        %908 = vmatpush1.msra.mxu0 0.0
        %909 = vmatprep.subr.mxu0 0.0
        %910 = vmatpush1.msra.mxu0 0.0
        %911 = vmatprep.subr.mxu0 0.0
        %912 = vmatpush1.msra.mxu0 0.0
        %913 = vmatprep.subr.mxu0 0.0
        %914 = vmatpush1.msra.mxu0 0.0
        %915 = vmatprep.subr.mxu0 0.0
        %916 = vmatpush1.msra.mxu0 0.0
        %917 = vmatprep.subr.mxu0 0.0
        %918 = vmatpush1.msra.mxu0 0.0
        %919 = vmatprep.subr.mxu0 0.0
        %920 = vmatpush1.msra.mxu0 0.0
        %921 = vmatprep.subr.mxu0 0.0
        %922 = vmatpush1.msra.mxu0 0.0
        %923 = vmatprep.subr.mxu0 0.0
        %924 = vmatpush1.msra.mxu0 0.0
        %925 = vmatprep.subr.mxu0 0.0
        %926 = vmatpush1.msra.mxu0 0.0
        %927 = vmatprep.subr.mxu0 0.0
        %928 = vmatpush1.msra.mxu0 0.0
        %929 = vmatprep.subr.mxu0 0.0
        %930 = vmatpush1.msra.mxu0 0.0
        %931 = vmatprep.subr.mxu0 0.0
        %932 = vmatpush1.msra.mxu0 0.0
        %933 = vmatprep.subr.mxu0 0.0
        %934 = vmatpush1.msra.mxu0 0.0
        %935 = vmatprep.subr.mxu0 0.0
        %936 = vmatpush1.msra.mxu0 0.0
        %937 = vmatprep.subr.mxu0 0.0
        %938 = vmatpush1.msra.mxu0 0.0
        %939 = vmatprep.subr.mxu0 0.0
        %940 = vmatpush1.msra.mxu0 0.0
        %941 = vmatprep.subr.mxu0 0.0
        %942 = vmatpush1.msra.mxu0 0.0
        %943 = vmatprep.subr.mxu0 0.0
        %944 = vmatpush1.msra.mxu0 0.0
        %945 = vmatprep.subr.mxu0 0.0
        %946 = vmatpush1.msra.mxu0 0.0
        %947 = vmatprep.subr.mxu0 0.0
        %948 = vmatpush1.msra.mxu0 0.0
        %949 = vmatprep.subr.mxu0 0.0
        %950 = vmatpush1.msra.mxu0 0.0
        %951 = vmatprep.mubr.f32.mxu0 0.0
        %952 = vmatmul.mubr.f32.gmra.mrb[0].mxu0 %v882
        %v953 = vpop.f32.mrb[0].mxu0
        %v954 = vadd.f32 %v873, %v953
        %v955 = vpop.f32.mrb[0].mxu0
        %956 = vmatprep.mubr.f32.mxu0 0.0
        %957 = vmatmul.mubr.f32.gmra.mrb[0].mxu0 %v885
        %v958 = vpop.f32.mrb[0].mxu0
        %v959 = vadd.f32 %v878, %v958
        %v960 = vpop.f32.mrb[0].mxu0
        %961 = vdwg.mxu0
        %v962 = vld [vmem:[%s6] sm:$0x1]
        %v964 = vlaneseq
        %v965 = vshrl.u32 %v964, 7
        %v966 = vsub.s32 0, %v965
        %v967 = vrot.slane %v962, %v966
        %v969 = vadd.f32 %v954, %v967
        %v970 = vadd.f32 %v959, %v967
        %v971 = vmax.f32 %v969, 0.0
        %v972 = vmax.f32 %v970, 0.0
        %v973 = vld [vmem:[%s7] sm:$0xff]
        %v974 = vld [vmem:[%s7 + $0x8] sm:$0xff]
        %v975 = vld [vmem:[%s7 + $0x10] sm:$0xff]
        %v976 = vld [vmem:[%s7 + $0x18] sm:$0xff]
        %v977 = vld [vmem:[%s8] sm:$0x1]
        %v979 = vlaneseq
        %v980 = vshrl.u32 %v979, 7
        %v981 = vsub.s32 0, %v980
        %v982 = vrot.slane %v977, %v981
        %vm984 = vcmask 261120
        %v986 = vsel %vm984, %v971, 0
        %v989 = vsel %vm984, %v972, 0
        %991 = vmatprep.subr.mxu0 0.0
        %992 = vmatpush1.msra.mxu0 %v973
        %993 = vmatprep.subr.mxu0 0.0
        %994 = vmatpush1.msra.mxu0 %v974
        %995 = vmatprep.subr.mxu0 0.0
        %996 = vmatpush1.msra.mxu0 %v975
        %997 = vmatprep.subr.mxu0 0.0
        %998 = vmatpush1.msra.mxu0 %v976
        %999 = vmatprep.subr.mxu0 0.0
        %1000 = vmatpush1.msra.mxu0 0.0
        %1001 = vmatprep.subr.mxu0 0.0
        %1002 = vmatpush1.msra.mxu0 0.0
        %1003 = vmatprep.subr.mxu0 0.0
        %1004 = vmatpush1.msra.mxu0 0.0
        %1005 = vmatprep.subr.mxu0 0.0
        %1006 = vmatpush1.msra.mxu0 0.0
        %1007 = vmatprep.subr.mxu0 0.0
        %1008 = vmatpush1.msra.mxu0 0.0
        %1009 = vmatprep.subr.mxu0 0.0
        %1010 = vmatpush1.msra.mxu0 0.0
        %1011 = vmatprep.subr.mxu0 0.0
        %1012 = vmatpush1.msra.mxu0 0.0
        %1013 = vmatprep.subr.mxu0 0.0
        %1014 = vmatpush1.msra.mxu0 0.0
        %1015 = vmatprep.subr.mxu0 0.0
        %1016 = vmatpush1.msra.mxu0 0.0
        %1017 = vmatprep.subr.mxu0 0.0
        %1018 = vmatpush1.msra.mxu0 0.0
        %1019 = vmatprep.subr.mxu0 0.0
        %1020 = vmatpush1.msra.mxu0 0.0
        %1021 = vmatprep.subr.mxu0 0.0
        %1022 = vmatpush1.msra.mxu0 0.0
        %1023 = vmatprep.subr.mxu0 0.0
        %1024 = vmatpush1.msra.mxu0 0.0
        %1025 = vmatprep.subr.mxu0 0.0
        %1026 = vmatpush1.msra.mxu0 0.0
        %1027 = vmatprep.subr.mxu0 0.0
        %1028 = vmatpush1.msra.mxu0 0.0
        %1029 = vmatprep.subr.mxu0 0.0
        %1030 = vmatpush1.msra.mxu0 0.0
        %1031 = vmatprep.subr.mxu0 0.0
        %1032 = vmatpush1.msra.mxu0 0.0
        %1033 = vmatprep.subr.mxu0 0.0
        %1034 = vmatpush1.msra.mxu0 0.0
        %1035 = vmatprep.subr.mxu0 0.0
        %1036 = vmatpush1.msra.mxu0 0.0
        %1037 = vmatprep.subr.mxu0 0.0
        %1038 = vmatpush1.msra.mxu0 0.0
        %1039 = vmatprep.subr.mxu0 0.0
        %1040 = vmatpush1.msra.mxu0 0.0
        %1041 = vmatprep.subr.mxu0 0.0
        %1042 = vmatpush1.msra.mxu0 0.0
        %1043 = vmatprep.subr.mxu0 0.0
        %1044 = vmatpush1.msra.mxu0 0.0
        %1045 = vmatprep.subr.mxu0 0.0
        %1046 = vmatpush1.msra.mxu0 0.0
        %1047 = vmatprep.subr.mxu0 0.0
        %1048 = vmatpush1.msra.mxu0 0.0
        %1049 = vmatprep.subr.mxu0 0.0
        %1050 = vmatpush1.msra.mxu0 0.0
        %1051 = vmatprep.subr.mxu0 0.0
        %1052 = vmatpush1.msra.mxu0 0.0
        %1053 = vmatprep.subr.mxu0 0.0
        %1054 = vmatpush1.msra.mxu0 0.0
        %1055 = vmatprep.mubr.f32.mxu0 0.0
        %1056 = vmatmul.mubr.f32.gmra.mrb[0].mxu0 %v986
        %v1057 = vpop.f32.mrb[0].mxu0
        %v1058 = vadd.f32 %v982, %v1057
        %v1059 = vpop.f32.mrb[0].mxu0
        %1060 = vmatprep.mubr.f32.mxu0 0.0
        %1061 = vmatmul.mubr.f32.gmra.mrb[0].mxu0 %v989
        %v1062 = vpop.f32.mrb[0].mxu0
        %v1063 = vadd.f32 %v982, %v1062
        %v1064 = vpop.f32.mrb[0].mxu0
        %1065 = vdwg.mxu0
        %v1066 = vmax.f32 %v1058, 0.0
        %v1067 = vmax.f32 %v1063, 0.0
        %1068 = vst [vmem:[%s404] sm:$0xff] %v1066
        %1069 = vst [vmem:[%s404 + $0x8] sm:$0xff] %v1067
        %s1070 = sand.u32 %s258, 1
        %s1071 = scalar_lea.sflag [#allocation3], %s1070
        %s1072 = sand.u32 %s258, 1
        %s1073 = smul.addr %s1072, 16
        %s1074 = scalar_lea.vmem [#allocation2], %s1073
        // Predicated region
        $region57: #{tpu_custom_call.1} parent=55 // pred_check
          %p1075 = pneg %p268
        $region58: #{tpu_custom_call.1} parent=55 // pred_check_branch
          %1077 = sbr.rel (%p1075) target = $region60
        $region59: #{tpu_custom_call.1} parent=55 // pred_region
          %s1078 = smul.u32 2, %s28
          %s1080 = ssub.s32 256, 256
          %1081 = vsyncadd %s1071, %s1080
          %s1082 = smul.addr %s27, 2
          %s1083 = sadd.s32 %s1078, %s1082
          %s1084 = smul.addr %s1083, 128
          %s1085 = scalar_lea.hbm %s9, %s1084
          %s1086 = sshll.u32 %s1074, 4
          %s1087 = int_to_ptr.vmem [resolvable:$true] %s1086
          %1092 = dma.vmem_to_hbm [thread:$0]  %s1087, 256, %s1085, %s1071, 128, 128, 8
        $region60: #{tpu_custom_call.1} parent=55 // pred_fallthru
          _
      $region56: #{tpu_custom_call.1} parent=5 // pred_fallthru
        _
      %p1093 = scmp.le.s32.totalorder 2, %s18
      // Predicated region
      $region61: #{tpu_custom_call.1} parent=5 // pred_check
        %p1094 = pneg %p1093
      $region62: #{tpu_custom_call.1} parent=5 // pred_check_branch
        %1096 = sbr.rel (%p1094) target = $region64
      $region63: #{tpu_custom_call.1} parent=5 // pred_region
        %s1097 = ssub.s32 %s18, 2
        // Predicated region
        $region65: #{tpu_custom_call.1} parent=63 // pred_check
          %p1098 = pneg %p274
        $region66: #{tpu_custom_call.1} parent=63 // pred_check_branch
          %1100 = sbr.rel (%p1098) target = $region68
        $region67: #{tpu_custom_call.1} parent=63 // pred_region
          %s1101 = sand.u32 %s259, 1
          %s1102 = scalar_lea.sflag [#allocation3], %s1101
          %s1103 = sand.u32 %s259, 1
          %s1104 = smul.addr %s1103, 16
          %s1105 = scalar_lea.vmem [#allocation2], %s1104
          %1106 = dma.done %s1102, 256
        $region68: #{tpu_custom_call.1} parent=63 // pred_fallthru
          _
      $region64: #{tpu_custom_call.1} parent=5 // pred_fallthru
        _
    $region6: #{tpu_custom_call.1} parent=1 // loop_footer
      %s22 = sadd.s32 1, %s18
    $region7: #{tpu_custom_call.1} parent=1 // loop_footer_branch
      %17 = sbr.rel target = $region3
    $region8: #{tpu_custom_call.1} parent=1 // loop_exit
      _
    %1107 = vsyncpa [#allocation3], 1
    %s1108 = scalar_lea.sflag [#allocation3], 1
    %1109 = vsyncpa %s1108, 1

</llo_original>
